<compile_context>
chip_gen: v6e
topology: v6e:2x2x1
jax: 0.10.0
libtpu: 0.0.40
codegen_flags: <defaults>
</compile_context>

<pallas_src>
import jax
import jax.numpy as jnp
from jax.experimental import pallas as pl
from jax.experimental.pallas import tpu as pltpu

LANE = 128


def mlp_kernel(p_ref, x_ref, o_ref):
    """p_ref: SMEM (11,) f32 = [w1 (2x3 row-major), b1 (2,), w2 (1x2), b2 (1,)].
    x_ref:  VMEM (3, TR, 128) tile -- batch spread over (sublane, lane).
    o_ref:  VMEM (TR, 128) tile."""
    x0 = x_ref[0]  # dense (TR, 128) slabs
    x1 = x_ref[1]
    x2 = x_ref[2]

    # Linear(3, 2): unrolled scalar-vector FMAs (pure VPU work, no MXU padding).
    h0 = p_ref[0] * x0 + p_ref[1] * x1 + p_ref[2] * x2 + p_ref[6]
    h1 = p_ref[3] * x0 + p_ref[4] * x1 + p_ref[5] * x2 + p_ref[7]

    # ReLU
    a0 = jnp.maximum(h0, 0.0)
    a1 = jnp.maximum(h1, 0.0)

    # Linear(2, 1): full-width unmasked (TR, 128) store.
    o_ref[...] = p_ref[8] * a0 + p_ref[9] * a1 + p_ref[10]


def _round_up(v, m):
    return (v + m - 1) // m * m


def mlp_forward_feature_major(x_fm, w1, b1, w2, b2, *, row_tile=2048):
    """x_fm: (3, N) feature-major f32.  Returns (N, 1) f32 = out(relu(hidden(x)))."""
    # TODO(synk): accept bf16 x (upcast in-kernel) when the upstream producer is
    # bf16 -- halves the dominant 12 B/element input HBM stream.
    n = x_fm.shape[1]
    row_tile = _round_up(row_tile, 8)

    # All 11 parameters packed into one SMEM-resident vector (no tiny VMEM DMAs).
    params = jnp.concatenate(
        [w1.reshape(-1), b1.reshape(-1), w2.reshape(-1), b2.reshape(-1)]
    ).astype(jnp.float32)  # (11,)

    # Pad the batch to 128-lane granularity only (<= 127 wasted elements), then
    # spread it over (sublane, lane): (3, N) -> (3, R, 128).
    r = pl.cdiv(n, LANE)
    n128 = r * LANE
    if n128 != n:
        x_fm = jnp.pad(x_fm, ((0, 0), (0, n128 - n)))
    x3d = x_fm.reshape(3, r, LANE)

    # Row-tile selection:
    #  * tiny batch  -> one block covering the whole array,
    #  * medium      -> split into >= 2 blocks (keeps both v7x TCs busy),
    #  * large       -> row_tile rows/step (~3 MiB in + 1 MiB out at 2048),
    # ragged last blocks are masked by Pallas.
    if r <= 8:
        tr = r
    elif r <= row_tile:
        tr = min(_round_up(pl.cdiv(r, 2), 8), r)
    else:
        tr = row_tile
    num_blocks = pl.cdiv(r, tr)

    x_index_map = lambda i: (0, i, 0)
    if num_blocks >= 3:
        # The pipeline is pure DMA; deeper buffering hides HBM latency jitter.
        x_spec = pl.BlockSpec((3, tr, LANE), x_index_map,
                              pipeline_mode=pl.Buffered(3))
    else:
        x_spec = pl.BlockSpec((3, tr, LANE), x_index_map)

    out = pl.pallas_call(
        mlp_kernel,
        out_shape=jax.ShapeDtypeStruct((r, LANE), jnp.float32),
        grid=(num_blocks,),
        in_specs=[
            pl.BlockSpec(memory_space=pltpu.MemorySpace.SMEM),  # params (whole array)
            x_spec,
        ],
        out_specs=pl.BlockSpec((tr, LANE), lambda i: (i, 0)),
        compiler_params=pltpu.CompilerParams(
            # Batch axis is embarrassingly parallel -> megacore sharding.
            dimension_semantics=("parallel",),
        ),
        # Memory-bound: 12 B in + 4 B out and ~18 VPU flops per batch element.
        cost_estimate=pl.CostEstimate(
            flops=18 * n128, transcendentals=0, bytes_accessed=16 * n128),
    )(params, x3d)

    # (R, 128) -> (N, 1): free contiguous reshape + slice, no transpose pass.
    return out.reshape(-1)[:n, None]


def mlp_forward(x, w1, b1, w2, b2, *, row_tile=2048):
    """x: (N, 3) in PyTorch nn.Linear layout.  Returns (N, 1).

    NOTE: the feature-major relayout below (x.T) is one extra XLA HBM pass over
    x; producers that can emit x as (3, N) should call
    mlp_forward_feature_major directly and skip it.
    """
    x_fm = x.astype(jnp.float32).T  # (3, N)
    return mlp_forward_feature_major(x_fm, w1, b1, w2, b2, row_tile=row_tile)


if __name__ == "__main__":
    key = jax.random.PRNGKey(0)
    kx, k1, k2, k3, k4 = jax.random.split(key, 5)

    batch = 8
    x = jax.random.normal(kx, (batch, 3), dtype=jnp.float32)

    # Deterministic parameter init (shapes follow nn.Linear(3,2) / nn.Linear(2,1)).
    w1 = jax.random.normal(k1, (2, 3), dtype=jnp.float32) * 0.5
    b1 = jax.random.normal(k2, (2,), dtype=jnp.float32) * 0.1
    w2 = jax.random.normal(k3, (1, 2), dtype=jnp.float32) * 0.5
    b2 = jax.random.normal(k4, (1,), dtype=jnp.float32) * 0.1

    out = mlp_forward(x, w1, b1, w2, b2)
    jax.block_until_ready(out)
    ref = jnp.maximum(x @ w1.T + b1, 0.0) @ w2.T + b2
    assert out.shape == (batch, 1)
    assert jnp.allclose(out, ref, atol=1e-5), "mismatch vs reference (batch=8)"

    # Exercise the 128-lane padding / tail-slice path.
    batch2 = 1000
    x2 = jax.random.normal(kx, (batch2, 3), dtype=jnp.float32)
    out2 = mlp_forward(x2, w1, b1, w2, b2)
    jax.block_until_ready(out2)
    ref2 = jnp.maximum(x2 @ w1.T + b1, 0.0) @ w2.T + b2
    assert out2.shape == (batch2, 1)
    assert jnp.allclose(out2, ref2, atol=1e-5), "mismatch vs reference (batch=1000)"

    # Exercise the multi-block grid with a ragged (Pallas-masked) tail block.
    batch3 = 4196
    x3 = jax.random.normal(kx, (batch3, 3), dtype=jnp.float32)
    out3 = mlp_forward(x3, w1, b1, w2, b2)
    jax.block_until_ready(out3)
    ref3 = jnp.maximum(x3 @ w1.T + b1, 0.0) @ w2.T + b2
    assert out3.shape == (batch3, 1)
    assert jnp.allclose(out3, ref3, atol=1e-5), "mismatch vs reference (batch=4196)"

    print("KERNEL_OK")
</pallas_src>

<mosaic_0001>
module attributes {stable_mosaic.version = 11 : i64} {
  func.func @mlp_kernel(%arg0: i32, %arg1: memref<11xf32, #tpu.memory_space<smem>>, %arg2: memref<3x1x128xf32, #tpu.memory_space<vmem>>, %arg3: memref<1x128xf32, #tpu.memory_space<vmem>>) attributes {dimension_semantics = [#tpu.dimension_semantics<parallel>], iteration_bounds = array<i64: 1>, scalar_prefetch = 0 : i64, scratch_operands = 0 : i64, tpu.core_type = #tpu.core_type<tc>, window_params = [{transform_indices = @transform_0, window_bounds = array<i64: 11>}, {transform_indices = @transform_1, window_bounds = array<i64: 3, 1, 128>}, {transform_indices = @transform_2, window_bounds = array<i64: 1, 128>}]} {
    %c0 = arith.constant 0 : index
    %c0_0 = arith.constant 0 : index
    %c0_1 = arith.constant 0 : index
    %0 = vector.load %arg2[%c0, %c0_0, %c0_1] : memref<3x1x128xf32, #tpu.memory_space<vmem>>, vector<1x1x128xf32>
    %1 = vector.shape_cast %0 : vector<1x1x128xf32> to vector<1x128xf32>
    %c1 = arith.constant 1 : index
    %c0_2 = arith.constant 0 : index
    %c0_3 = arith.constant 0 : index
    %2 = vector.load %arg2[%c1, %c0_2, %c0_3] : memref<3x1x128xf32, #tpu.memory_space<vmem>>, vector<1x1x128xf32>
    %3 = vector.shape_cast %2 : vector<1x1x128xf32> to vector<1x128xf32>
    %c2 = arith.constant 2 : index
    %c0_4 = arith.constant 0 : index
    %c0_5 = arith.constant 0 : index
    %4 = vector.load %arg2[%c2, %c0_4, %c0_5] : memref<3x1x128xf32, #tpu.memory_space<vmem>>, vector<1x1x128xf32>
    %5 = vector.shape_cast %4 : vector<1x1x128xf32> to vector<1x128xf32>
    %c0_6 = arith.constant 0 : index
    %6 = memref.load %arg1[%c0_6] : memref<11xf32, #tpu.memory_space<smem>>
    %7 = vector.broadcast %6 : f32 to vector<1x128xf32>
    %8 = arith.mulf %7, %1 : vector<1x128xf32>
    %c1_7 = arith.constant 1 : index
    %9 = memref.load %arg1[%c1_7] : memref<11xf32, #tpu.memory_space<smem>>
    %10 = vector.broadcast %9 : f32 to vector<1x128xf32>
    %11 = arith.mulf %10, %3 : vector<1x128xf32>
    %12 = arith.addf %8, %11 : vector<1x128xf32>
    %c2_8 = arith.constant 2 : index
    %13 = memref.load %arg1[%c2_8] : memref<11xf32, #tpu.memory_space<smem>>
    %14 = vector.broadcast %13 : f32 to vector<1x128xf32>
    %15 = arith.mulf %14, %5 : vector<1x128xf32>
    %16 = arith.addf %12, %15 : vector<1x128xf32>
    %c6 = arith.constant 6 : index
    %17 = memref.load %arg1[%c6] : memref<11xf32, #tpu.memory_space<smem>>
    %18 = vector.broadcast %17 : f32 to vector<1x128xf32>
    %19 = arith.addf %16, %18 : vector<1x128xf32>
    %c3 = arith.constant 3 : index
    %20 = memref.load %arg1[%c3] : memref<11xf32, #tpu.memory_space<smem>>
    %21 = vector.broadcast %20 : f32 to vector<1x128xf32>
    %22 = arith.mulf %21, %1 : vector<1x128xf32>
    %c4 = arith.constant 4 : index
    %23 = memref.load %arg1[%c4] : memref<11xf32, #tpu.memory_space<smem>>
    %24 = vector.broadcast %23 : f32 to vector<1x128xf32>
    %25 = arith.mulf %24, %3 : vector<1x128xf32>
    %26 = arith.addf %22, %25 : vector<1x128xf32>
    %c5 = arith.constant 5 : index
    %27 = memref.load %arg1[%c5] : memref<11xf32, #tpu.memory_space<smem>>
    %28 = vector.broadcast %27 : f32 to vector<1x128xf32>
    %29 = arith.mulf %28, %5 : vector<1x128xf32>
    %30 = arith.addf %26, %29 : vector<1x128xf32>
    %c7 = arith.constant 7 : index
    %31 = memref.load %arg1[%c7] : memref<11xf32, #tpu.memory_space<smem>>
    %32 = vector.broadcast %31 : f32 to vector<1x128xf32>
    %33 = arith.addf %30, %32 : vector<1x128xf32>
    %cst = arith.constant 0.000000e+00 : f32
    %34 = vector.broadcast %cst : f32 to vector<1x128xf32>
    %35 = arith.maximumf %19, %34 : vector<1x128xf32>
    %cst_9 = arith.constant 0.000000e+00 : f32
    %36 = vector.broadcast %cst_9 : f32 to vector<1x128xf32>
    %37 = arith.maximumf %33, %36 : vector<1x128xf32>
    %c8 = arith.constant 8 : index
    %38 = memref.load %arg1[%c8] : memref<11xf32, #tpu.memory_space<smem>>
    %39 = vector.broadcast %38 : f32 to vector<1x128xf32>
    %40 = arith.mulf %39, %35 : vector<1x128xf32>
    %c9 = arith.constant 9 : index
    %41 = memref.load %arg1[%c9] : memref<11xf32, #tpu.memory_space<smem>>
    %42 = vector.broadcast %41 : f32 to vector<1x128xf32>
    %43 = arith.mulf %42, %37 : vector<1x128xf32>
    %44 = arith.addf %40, %43 : vector<1x128xf32>
    %c10 = arith.constant 10 : index
    %45 = memref.load %arg1[%c10] : memref<11xf32, #tpu.memory_space<smem>>
    %46 = vector.broadcast %45 : f32 to vector<1x128xf32>
    %47 = arith.addf %44, %46 : vector<1x128xf32>
    %c0_10 = arith.constant 0 : index
    %c0_11 = arith.constant 0 : index
    %48 = vector.load %arg3[%c0_10, %c0_11] : memref<1x128xf32, #tpu.memory_space<vmem>>, vector<1x128xf32>
    tpu.vector_store %arg3[%c0_10, %c0_11], %47 {strides = array<i32>} : memref<1x128xf32, #tpu.memory_space<vmem>>, vector<1x128xf32>,
    return
  }
  func.func @transform_0(%arg0: i32) -> i32 {
    %c0_i32 = arith.constant 0 : i32
    %c0_i32_0 = arith.constant 0 : i32
    return %c0_i32 : i32
  }
  func.func @transform_1(%arg0: i32) -> (i32, i32, i32) {
    %c0_i32 = arith.constant 0 : i32
    %c0_i32_0 = arith.constant 0 : i32
    %c0_i32_1 = arith.constant 0 : i32
    return %c0_i32, %arg0, %c0_i32_0 : i32, i32, i32
  }
  func.func @transform_2(%arg0: i32) -> (i32, i32) {
    %c0_i32 = arith.constant 0 : i32
    %c0_i32_0 = arith.constant 0 : i32
    return %arg0, %c0_i32 : i32, i32
  }
}

</mosaic_0001>

<llo_original>
// kernel: tpu_custom_call.1
$region0: #{tpu_custom_call.1}
  #allocation0 [shape = 'u32[]', space=smem, size = 0x4, offset = 0x4, fixed_abs, tag = 'smem constant byte address 0x4 - core index']
  #allocation1 [shape = 'u32[144,128]{1,0:T(1,128)}', space=vmem, size = 0x12000, scoped, tag = 'internal scratch']
  %s0 = inlined_call_operand.hbm [shape: f32[11], index: 0, kind: input, shape index: {}]
  %s1 = inlined_call_operand.hbm [shape: f32[3,1,128], index: 1, kind: input, shape index: {}]
  %s2 = inlined_call_operand.hbm [shape: f32[1,128], index: 2, kind: output, shape index: {}]
  %s3 = sld [smem:[#allocation0]]
  $region26: #{tpu_custom_call.1} parent=0
    _
  %s5 = ssub.s32 1, %s3
  %s6 = scalar_select 0, %s5, %s3
  $region1: #{tpu_custom_call.1} parent=0
    #allocation2 [shape = 'u8[512]{0}', space=smem, size = 0x200, scoped, tag = 'input window, operand 0, single buffered']
    #allocation3 [shape = 's32[1]{0}', space=sflag, size = 0x4, scoped, tag = 'scoped memory for tpu_custom_call.1']
    #allocation4 [shape = 's32[1]{0}', space=sflag, size = 0x4, scoped, tag = 'scoped memory for tpu_custom_call.1']
    #allocation5 [shape = 's32[1]{0}', space=sflag, size = 0x4, scoped, tag = 'scoped memory for tpu_custom_call.1']
    #allocation6 [shape = 'u8[1536]{0}', space=vmem, size = 0x800, scoped, tag = 'input window, operand 1, single buffered']
    #allocation7 [shape = 'u8[512]{0}', space=vmem, size = 0x400, scoped, tag = 'output window, operand 0, single buffered']
    %7 = vsyncpa [#allocation5], 0
    %8 = vsyncpa [#allocation3], 0
    %9 = vsyncpa [#allocation4], 0
    // Predicated region
    $region2: #{tpu_custom_call.1} parent=1 // pred_check
      _
    $region3: #{tpu_custom_call.1} parent=1 // pred_check_branch
      %11 = sbr.rel (0) target = $region5
    $region4: #{tpu_custom_call.1} parent=1 // pred_region
      %s13 = ssub.s32 16, 16
      %14 = vsyncadd [#allocation5], %s13
      %17 = dma.hbm_to_smem %s0, 16, [#allocation2], [#allocation5]
    $region5: #{tpu_custom_call.1} parent=1 // pred_fallthru
      _
    // Predicated region
    $region6: #{tpu_custom_call.1} parent=1 // pred_check
      _
    $region7: #{tpu_custom_call.1} parent=1 // pred_check_branch
      %19 = sbr.rel (0) target = $region9
    $region8: #{tpu_custom_call.1} parent=1 // pred_region
      %s21 = ssub.s32 48, 48
      %22 = vsyncadd [#allocation3], %s21
      %s23 = sshll.u32 [#allocation6], 4
      %s24 = int_to_ptr.vmem [resolvable:$true] %s23
      %29 = dma.hbm_to_vmem [thread:$0]  %s1, 48, %s24, [#allocation3], 16, 16, 1
    $region9: #{tpu_custom_call.1} parent=1 // pred_fallthru
      _
    // Predicated region
    $region10: #{tpu_custom_call.1} parent=1 // pred_check
      _
    $region11: #{tpu_custom_call.1} parent=1 // pred_check_branch
      %31 = sbr.rel (0) target = $region13
    $region12: #{tpu_custom_call.1} parent=1 // pred_region
      %32 = dma.done [#allocation5], 16
    $region13: #{tpu_custom_call.1} parent=1 // pred_fallthru
      _
    // Predicated region
    $region14: #{tpu_custom_call.1} parent=1 // pred_check
      _
    $region15: #{tpu_custom_call.1} parent=1 // pred_check_branch
      %34 = sbr.rel (0) target = $region17
    $region16: #{tpu_custom_call.1} parent=1 // pred_region
      %35 = dma.done [#allocation3], 48
    $region17: #{tpu_custom_call.1} parent=1 // pred_fallthru
      _
    %36 = sfence
    %v37 = vld [vmem:[#allocation6] sm:$0x1]
    %s38 = scalar_lea.vmem [#allocation6], 1
    %v39 = vld [vmem:[%s38] sm:$0x1]
    %s40 = scalar_lea.vmem [#allocation6], 2
    %v41 = vld [vmem:[%s40] sm:$0x1]
    %s42 = sld [smem:[#allocation2]]
    %v43 = vstv %s42
    %v44 = vmul.f32 %v43, %v37
    %s45 = sld [smem:[#allocation2 + $0x1]]
    %v46 = vstv %s45
    %v47 = vmul.f32 %v46, %v39
    %v48 = vadd.f32 %v44, %v47
    %s49 = sld [smem:[#allocation2 + $0x2]]
    %v50 = vstv %s49
    %v51 = vmul.f32 %v50, %v41
    %v52 = vadd.f32 %v48, %v51
    %s53 = sld [smem:[#allocation2 + $0x6]]
    %v54 = vstv %s53
    %v55 = vadd.f32 %v52, %v54
    %s56 = sld [smem:[#allocation2 + $0x3]]
    %v57 = vstv %s56
    %v58 = vmul.f32 %v57, %v37
    %s59 = sld [smem:[#allocation2 + $0x4]]
    %v60 = vstv %s59
    %v61 = vmul.f32 %v60, %v39
    %v62 = vadd.f32 %v58, %v61
    %s63 = sld [smem:[#allocation2 + $0x5]]
    %v64 = vstv %s63
    %v65 = vmul.f32 %v64, %v41
    %v66 = vadd.f32 %v62, %v65
    %s67 = sld [smem:[#allocation2 + $0x7]]
    %v68 = vstv %s67
    %v69 = vadd.f32 %v66, %v68
    %v70 = vmax.f32 %v55, 0.0
    %v71 = vmax.f32 %v69, 0.0
    %s72 = sld [smem:[#allocation2 + $0x8]]
    %v73 = vstv %s72
    %v74 = vmul.f32 %v73, %v70
    %s75 = sld [smem:[#allocation2 + $0x9]]
    %v76 = vstv %s75
    %v77 = vmul.f32 %v76, %v71
    %v78 = vadd.f32 %v74, %v77
    %s79 = sld [smem:[#allocation2 + $0xa]]
    %v80 = vstv %s79
    %v81 = vadd.f32 %v78, %v80
    %82 = vst [vmem:[#allocation7] sm:$0x1] %v81
    // Predicated region
    $region18: #{tpu_custom_call.1} parent=1 // pred_check
      _
    $region19: #{tpu_custom_call.1} parent=1 // pred_check_branch
      %84 = sbr.rel (0) target = $region21
    $region20: #{tpu_custom_call.1} parent=1 // pred_region
      %s86 = ssub.s32 16, 16
      %87 = vsyncadd [#allocation4], %s86
      %s89 = sshll.u32 [#allocation7], 4
      %s90 = int_to_ptr.vmem [resolvable:$true] %s89
      %92 = dma.vmem_to_hbm [thread:$0]  %s90, 16, %s2, [#allocation4]
    $region21: #{tpu_custom_call.1} parent=1 // pred_fallthru
      _
    // Predicated region
    $region22: #{tpu_custom_call.1} parent=1 // pred_check
      _
    $region23: #{tpu_custom_call.1} parent=1 // pred_check_branch
      %94 = sbr.rel (0) target = $region25
    $region24: #{tpu_custom_call.1} parent=1 // pred_region
      %95 = dma.done [#allocation4], 16
    $region25: #{tpu_custom_call.1} parent=1 // pred_fallthru
      _
    %96 = vsyncpa [#allocation3], 1
    %97 = vsyncpa [#allocation4], 1
    %98 = vsyncpa [#allocation5], 1

</llo_original>
